<compile_context>
chip_gen: v6e
topology: v6e:2x2x1
jax: 0.10.0
libtpu: 0.0.40
codegen_flags: <defaults>
</compile_context>

<pallas_src>
import jax
import jax.numpy as jnp
from jax.experimental import pallas as pl
from jax.experimental.pallas import tpu as pltpu


def min_value_forward(m: jax.Array) -> jax.Array:
    """Zero-overhead forward: MinValue.forward() is just the parameter read.

    Recommended production path — the consumer uses `m` in place (or takes it
    as a scalar-prefetch / SMEM arg inside its own Pallas kernel).
    """
    return m


def _min_value_kernel(m_ref, o_ref):
    # Pure scalar copy on the SMEM path: only the scalar-ALU slot is used,
    # no vector load/store, no MXU/VPU/XLU traffic.  The explicit write also
    # keeps the (aliased) output from being dead-code-eliminated.
    o_ref[0] = m_ref[0]


@jax.jit
def _min_value_pallas_call(m: jax.Array) -> jax.Array:
    return pl.pallas_call(
        _min_value_kernel,
        out_shape=jax.ShapeDtypeStruct(m.shape, m.dtype),
        in_specs=[pl.BlockSpec(memory_space=pltpu.MemorySpace.SMEM)],
        out_specs=pl.BlockSpec(memory_space=pltpu.MemorySpace.SMEM),
        # Output aliases the input buffer: removes the separate output
        # allocation / writeback for the 4-byte result.
        input_output_aliases={0: 0},
        # Tell XLA's scheduler this custom call is effectively free.
        cost_estimate=pl.CostEstimate(flops=0, transcendentals=0,
                                      bytes_accessed=8),
    )(m)


def min_value_forward_pallas(m: jax.Array) -> jax.Array:
    """Explicit Pallas kernel path (kept only as a fusion anchor).

    NOT the production path — use `min_value_forward` (identity) instead.
    A private copy of `m` is passed so the aliased/donated input never
    invalidates the caller's parameter buffer.
    """
    return _min_value_pallas_call(m + jnp.zeros((), m.dtype))


if __name__ == "__main__":
    # Deterministic parameter init: matches nn.Parameter(torch.zeros(1)).
    key = jax.random.PRNGKey(0)  # unused for zeros init, kept for convention
    m_param = jnp.zeros((1,), dtype=jnp.float32)

    # Recommended (zero-cost) production path.
    out_fast = min_value_forward(m_param)

    # Standalone Pallas kernel path (SMEM scalar copy, aliased output).
    out_pallas = jax.block_until_ready(min_value_forward_pallas(m_param))

    expected = jnp.zeros((1,), dtype=jnp.float32)
    assert out_pallas.shape == (1,)
    assert out_pallas.dtype == jnp.float32
    assert bool(jnp.array_equal(out_pallas, expected))
    assert bool(jnp.array_equal(out_fast, expected))

    print("KERNEL_OK")
</pallas_src>

<mosaic_0001>
module attributes {stable_mosaic.version = 11 : i64} {
  func.func @_min_value_kernel(%arg0: memref<1xf32, #tpu.memory_space<smem>>, %arg1: memref<1xf32, #tpu.memory_space<smem>>) attributes {dimension_semantics = [], scalar_prefetch = 0 : i64, scratch_operands = 0 : i64, tpu.core_type = #tpu.core_type<tc>} {
    %c0 = arith.constant 0 : index
    %0 = memref.load %arg0[%c0] : memref<1xf32, #tpu.memory_space<smem>>
    %c0_0 = arith.constant 0 : index
    %1 = memref.load %arg1[%c0_0] : memref<1xf32, #tpu.memory_space<smem>>
    memref.store %0, %arg1[%c0_0] : memref<1xf32, #tpu.memory_space<smem>>
    return
  }
}

</mosaic_0001>

<llo_original>
// kernel: _min_value_pallas_call.1
$region0: #{_min_value_pallas_call.1}
  #allocation0 [shape = 'u32[]', space=smem, size = 0x4, offset = 0x4, fixed_abs, tag = 'smem constant byte address 0x4 - core index']
  #allocation1 [shape = 'u32[144,128]{1,0:T(1,128)}', space=vmem, size = 0x12000, scoped, tag = 'internal scratch']
  #allocation2 [shape = 'f32[1]{0:T(128)S(6)}', space=smem, size = 0x200, scoped, tag = 'scoped memory for _min_value_pallas_call.1']
  %s0 = inlined_call_operand.<no memory space> [shape: f32[1], index: 0, kind: input, shape index: {}, may-alias: {0,1}]
  %s1 = inlined_call_operand.hbm [shape: f32[1], index: 1, kind: output, shape index: {}, may-alias: {0,1}]
  %s2 = sld [smem:[#allocation0]]
  $region14: #{_min_value_pallas_call.1} parent=0
    _
  %s4 = ssub.s32 1, %s2
  %s5 = scalar_select 0, %s4, %s2
  %6 = sst [smem:[#allocation2]] %s0
  $region1: #{_min_value_pallas_call.1} parent=0
    #allocation3 [shape = 'u8[512]{0}', space=smem, size = 0x200, scoped, tag = 'output window, operand 0, single buffered']
    #allocation4 [shape = 's32[1]{0}', space=sflag, size = 0x4, scoped, tag = 'scoped memory for _min_value_pallas_call.1']
    %7 = vsyncpa [#allocation4], 0
    // Predicated region
    $region2: #{_min_value_pallas_call.1} parent=1 // pred_check
      _
    $region3: #{_min_value_pallas_call.1} parent=1 // pred_check_branch
      %9 = sbr.rel (0) target = $region5
    $region4: #{_min_value_pallas_call.1} parent=1 // pred_region
      _
    $region5: #{_min_value_pallas_call.1} parent=1 // pred_fallthru
      _
    %s10 = sld [smem:[#allocation2]]
    %s11 = scalar_lea.smem [#allocation3], 0
    %12 = sst [smem:[%s11]] %s10
    // Predicated region
    $region6: #{_min_value_pallas_call.1} parent=1 // pred_check
      _
    $region7: #{_min_value_pallas_call.1} parent=1 // pred_check_branch
      %14 = sbr.rel (0) target = $region9
    $region8: #{_min_value_pallas_call.1} parent=1 // pred_region
      %s16 = ssub.s32 16, 16
      %17 = vsyncadd [#allocation4], %s16
      %20 = dma.smem_to_hbm [#allocation3], 16, %s1, [#allocation4]
    $region9: #{_min_value_pallas_call.1} parent=1 // pred_fallthru
      _
    // Predicated region
    $region10: #{_min_value_pallas_call.1} parent=1 // pred_check
      _
    $region11: #{_min_value_pallas_call.1} parent=1 // pred_check_branch
      %22 = sbr.rel (0) target = $region13
    $region12: #{_min_value_pallas_call.1} parent=1 // pred_region
      %23 = dma.done [#allocation4], 16
    $region13: #{_min_value_pallas_call.1} parent=1 // pred_fallthru
      _
    %24 = sfence
    %25 = vsyncpa [#allocation4], 1

</llo_original>
